<compile_context>
chip_gen: v7x
topology: tpu7x:2x2x1
jax: 0.10.0
libtpu: 0.0.40
codegen_flags: <defaults>
</compile_context>

<pallas_src>
import jax
import jax.numpy as jnp
from jax.experimental import pallas as pl
from jax.experimental.pallas import tpu as pltpu


# ----------------------------- kernel ---------------------------------------
def _rotary_kernel(x_ref, cos_ref, sin_even_ref, sin_odd_ref, o_ref):
    x = x_ref[...]                        # (tile_r, tile_l), x.dtype
    tl = x.shape[-1]                      # static tile width (multiple of 128)
    cos = cos_ref[...]                    # (1, tile_l), pre-cast to x.dtype
    sin_e = sin_even_ref[...]             # = -sin on even lanes, 0 on odd
    sin_o = sin_odd_ref[...]              # = +sin on odd lanes, 0 on even
    # rotate_half(x)[2i] = -x[2i+1], rotate_half(x)[2i+1] = x[2i]
    #   => rotate_half(x) * sin == roll(x,-1)*sin_e + roll(x,+1)*sin_o
    # pltpu.roll needs a non-negative shift: roll by -1 == roll by tl-1.
    # Pairs never straddle a lane-tile boundary (tile_l is a multiple of 128,
    # hence even) and the wrapped element of each roll always lands on a lane
    # where the folded sin table is exactly zero.
    x_left = pltpu.roll(x, tl - 1, 1)     # lane k gets x[k+1]  (XLU vrot)
    x_right = pltpu.roll(x, 1, 1)         # lane k gets x[k-1]  (XLU vrot)
    term1 = x * cos
    term2 = x_left * sin_e + x_right * sin_o   # disjoint nonzero lanes -> exact
    o_ref[...] = (term1.astype(jnp.float32)
                  + term2.astype(jnp.float32)).astype(o_ref.dtype)


# ----------------------------- wrapper ---------------------------------------
def _tile_size(n, cap, align):
    """Largest multiple of `align` that divides n and is <= cap."""
    cap = min(cap, n)
    t = cap - cap % align
    while t >= align:
        if n % t == 0:
            return t
        t -= align
    # Only reachable when n is not a multiple of `align`; the wrapper pads the
    # slab so this never produces an oversized block in practice.
    return n


def rotary_embedding(x, cos_emb, sin_emb, *, row_cap=512, lane_cap=2048,
                     donate_input=False):
    """Matches RotaryEmbedding.forward: x * cos + rotate_half(x) * sin."""
    orig_shape = x.shape
    N, Dh = cos_emb.shape
    assert x.shape[-2:] == (N, Dh), (x.shape, cos_emb.shape)
    assert Dh % 2 == 0, "rotary feature dim must be even"
    L = N * Dh
    R = 1
    for d in orig_shape[:-2]:
        R *= d
    R = max(R, 1)
    dt = x.dtype

    x2 = x.reshape(R, L)                            # free reshape, no transpose

    # Fold rotate_half's sign and the even/odd parity masks into the sin
    # tables (host-side, tiny, computed once); ship them in x.dtype so the
    # kernel does no per-tile casts and table DMA bytes are halved for bf16.
    even = (jnp.arange(Dh) % 2 == 0)[None, :]
    sin_f = sin_emb.astype(jnp.float32)
    cos_t = cos_emb.astype(jnp.float32).reshape(1, L).astype(dt)
    sin_even = jnp.where(even, -sin_f, 0.0).reshape(1, L).astype(dt)
    sin_odd = jnp.where(even, 0.0, sin_f).reshape(1, L).astype(dt)

    # Pad to (8, 128) alignment so tiling never falls back to one giant block.
    Rp = R + (-R) % 8
    Lp = L + (-L) % 128
    padded = (Rp != R) or (Lp != L)
    if padded:
        x2 = jnp.pad(x2, ((0, Rp - R), (0, Lp - L)))
        cos_t = jnp.pad(cos_t, ((0, 0), (0, Lp - L)))
        sin_even = jnp.pad(sin_even, ((0, 0), (0, Lp - L)))
        sin_odd = jnp.pad(sin_odd, ((0, 0), (0, Lp - L)))

    tile_r = _tile_size(Rp, row_cap, 8)
    tile_l = _tile_size(Lp, lane_cap, 128)
    # Lane tiles OUTER, row tiles INNER: table block indices are constant
    # across consecutive (inner) steps, so their DMAs are skipped.
    grid = (Lp // tile_l, Rp // tile_r)

    aliases = {0: 0} if (donate_input and not padded) else {}

    out = pl.pallas_call(
        _rotary_kernel,
        grid=grid,
        in_specs=[
            pl.BlockSpec((tile_r, tile_l), lambda j, i: (i, j)),
            pl.BlockSpec((1, tile_l), lambda j, i: (0, j)),   # cos: resident per j
            pl.BlockSpec((1, tile_l), lambda j, i: (0, j)),
            pl.BlockSpec((1, tile_l), lambda j, i: (0, j)),
        ],
        out_specs=pl.BlockSpec((tile_r, tile_l), lambda j, i: (i, j)),
        out_shape=jax.ShapeDtypeStruct((Rp, Lp), dt),
        compiler_params=pltpu.CompilerParams(
            dimension_semantics=("parallel", "parallel"),
            vmem_limit_bytes=48 * 1024 * 1024),
        input_output_aliases=aliases,
    )(x2, cos_t, sin_even, sin_odd)

    if padded:
        out = out[:R, :L]
    return out.reshape(orig_shape)


# --------------------- demo helpers (deterministic) ---------------------------
def make_rotary_tables(seq_len, dim_head):
    inv_freq = 1.0 / (10000.0 ** (jnp.arange(0, dim_head, 2, dtype=jnp.float32)
                                  / dim_head))
    t = jnp.arange(seq_len, dtype=jnp.float32)
    freqs = jnp.einsum("n,d->nd", t, inv_freq)
    freqs = jnp.repeat(freqs, 2, axis=-1)           # interleaved (d r) pairs
    return jnp.cos(freqs), jnp.sin(freqs)


def rotary_reference(x, cos_emb, sin_emb):
    # Pure-JAX transcription of the PyTorch forward (for validation).
    cos = cos_emb[None, None].astype(x.dtype)
    sin = sin_emb[None, None].astype(x.dtype)
    xp = x.reshape(x.shape[:-1] + (x.shape[-1] // 2, 2))
    x1, x2 = xp[..., 0], xp[..., 1]
    rot = jnp.stack((-x2, x1), axis=-1).reshape(x.shape)
    s = (x * cos).astype(jnp.float32) + (rot * sin).astype(jnp.float32)
    return s.astype(x.dtype)


if __name__ == "__main__":
    # Primary example: (batch, heads, seq, dim_head) as fed by the attention.
    B, H, N, Dh = 2, 4, 8, 16
    x = jax.random.normal(jax.random.PRNGKey(0), (B, H, N, Dh), jnp.float32)
    cos_emb, sin_emb = make_rotary_tables(N, Dh)

    y = rotary_embedding(x, cos_emb, sin_emb)
    jax.block_until_ready(y)
    y_ref = rotary_reference(x, cos_emb, sin_emb)
    assert y.shape == x.shape
    assert float(jnp.max(jnp.abs(y - y_ref))) < 1e-5

    # Unaligned sequence length exercises the (8,128) padding path.
    N2 = 9
    x2 = jax.random.normal(jax.random.PRNGKey(1), (B, H, N2, Dh), jnp.float32)
    cos2, sin2 = make_rotary_tables(N2, Dh)
    y2 = rotary_embedding(x2, cos2, sin2)
    jax.block_until_ready(y2)
    y2_ref = rotary_reference(x2, cos2, sin2)
    assert float(jnp.max(jnp.abs(y2 - y2_ref))) < 1e-5

    print("KERNEL_OK")
</pallas_src>

<mosaic_0001>
module attributes {stable_mosaic.version = 11 : i64} {
  func.func @_rotary_kernel(%arg0: i32, %arg1: i32, %arg2: memref<8x128xf32, #tpu.memory_space<vmem>>, %arg3: memref<1x128xf32, #tpu.memory_space<vmem>>, %arg4: memref<1x128xf32, #tpu.memory_space<vmem>>, %arg5: memref<1x128xf32, #tpu.memory_space<vmem>>, %arg6: memref<8x128xf32, #tpu.memory_space<vmem>>) attributes {dimension_semantics = [#tpu.dimension_semantics<parallel>, #tpu.dimension_semantics<parallel>], iteration_bounds = array<i64: 1, 1>, scalar_prefetch = 0 : i64, scratch_operands = 0 : i64, tpu.core_type = #tpu.core_type<tc>, window_params = [{transform_indices = @transform_0, window_bounds = array<i64: 8, 128>}, {transform_indices = @transform_1, window_bounds = array<i64: 1, 128>}, {transform_indices = @transform_2, window_bounds = array<i64: 1, 128>}, {transform_indices = @transform_3, window_bounds = array<i64: 1, 128>}, {transform_indices = @transform_4, window_bounds = array<i64: 8, 128>}]} {
    %c0 = arith.constant 0 : index
    %c0_0 = arith.constant 0 : index
    %0 = vector.load %arg2[%c0, %c0_0] : memref<8x128xf32, #tpu.memory_space<vmem>>, vector<8x128xf32>
    %c0_1 = arith.constant 0 : index
    %c0_2 = arith.constant 0 : index
    %1 = vector.load %arg3[%c0_1, %c0_2] : memref<1x128xf32, #tpu.memory_space<vmem>>, vector<1x128xf32>
    %c0_3 = arith.constant 0 : index
    %c0_4 = arith.constant 0 : index
    %2 = vector.load %arg4[%c0_3, %c0_4] : memref<1x128xf32, #tpu.memory_space<vmem>>, vector<1x128xf32>
    %c0_5 = arith.constant 0 : index
    %c0_6 = arith.constant 0 : index
    %3 = vector.load %arg5[%c0_5, %c0_6] : memref<1x128xf32, #tpu.memory_space<vmem>>, vector<1x128xf32>
    %c127_i32 = arith.constant 127 : i32
    %4 = tpu.dynamic_rotate %0 by %c127_i32 dim 1 : vector<8x128xf32>, i32 -> vector<8x128xf32>
    %c1_i32 = arith.constant 1 : i32
    %5 = tpu.dynamic_rotate %0 by %c1_i32 dim 1 : vector<8x128xf32>, i32 -> vector<8x128xf32>
    %6 = vector.broadcast %1 : vector<1x128xf32> to vector<8x128xf32>
    %7 = arith.mulf %0, %6 : vector<8x128xf32>
    %8 = vector.broadcast %2 : vector<1x128xf32> to vector<8x128xf32>
    %9 = arith.mulf %4, %8 : vector<8x128xf32>
    %10 = vector.broadcast %3 : vector<1x128xf32> to vector<8x128xf32>
    %11 = arith.mulf %5, %10 : vector<8x128xf32>
    %12 = arith.addf %9, %11 : vector<8x128xf32>
    %13 = arith.addf %7, %12 : vector<8x128xf32>
    %c0_7 = arith.constant 0 : index
    %c0_8 = arith.constant 0 : index
    %14 = vector.load %arg6[%c0_7, %c0_8] : memref<8x128xf32, #tpu.memory_space<vmem>>, vector<8x128xf32>
    tpu.vector_store %arg6[%c0_7, %c0_8], %13 {strides = array<i32>} : memref<8x128xf32, #tpu.memory_space<vmem>>, vector<8x128xf32>,
    return
  }
  func.func @transform_0(%arg0: i32, %arg1: i32) -> (i32, i32) {
    %c0_i32 = arith.constant 0 : i32
    return %arg1, %arg0 : i32, i32
  }
  func.func @transform_1(%arg0: i32, %arg1: i32) -> (i32, i32) {
    %c0_i32 = arith.constant 0 : i32
    %c0_i32_0 = arith.constant 0 : i32
    return %c0_i32, %arg0 : i32, i32
  }
  func.func @transform_2(%arg0: i32, %arg1: i32) -> (i32, i32) {
    %c0_i32 = arith.constant 0 : i32
    %c0_i32_0 = arith.constant 0 : i32
    return %c0_i32, %arg0 : i32, i32
  }
  func.func @transform_3(%arg0: i32, %arg1: i32) -> (i32, i32) {
    %c0_i32 = arith.constant 0 : i32
    %c0_i32_0 = arith.constant 0 : i32
    return %c0_i32, %arg0 : i32, i32
  }
  func.func @transform_4(%arg0: i32, %arg1: i32) -> (i32, i32) {
    %c0_i32 = arith.constant 0 : i32
    return %arg1, %arg0 : i32, i32
  }
}

</mosaic_0001>

<llo_original>
// kernel: tpu_custom_call.1
$region0: #{tpu_custom_call.1}
  #allocation0 [shape = 'u32[]', space=smem, size = 0x4, offset = 0x4, fixed_abs, tag = 'smem constant byte address 0x4 - core index']
  #allocation1 [shape = 'u32[144,128]{1,0:T(1,128)}', space=vmem, size = 0x12000, scoped, tag = 'internal scratch']
  %s0 = inlined_call_operand.hbm [shape: f32[8,128], index: 0, kind: input, shape index: {}]
  %s1 = inlined_call_operand.vmem [shape: f32[1,128], index: 1, kind: input, shape index: {}]
  %s2 = inlined_call_operand.vmem [shape: f32[1,128], index: 2, kind: input, shape index: {}]
  %s3 = inlined_call_operand.vmem [shape: f32[1,128], index: 3, kind: input, shape index: {}]
  %s4 = inlined_call_operand.hbm [shape: f32[8,128], index: 4, kind: output, shape index: {}]
  %s5 = sld [smem:[#allocation0]]
  $region30: #{tpu_custom_call.1} parent=0
    _
  %s7 = ssub.s32 1, %s5
  %s8 = scalar_select 0, %s7, %s5
  $region1: #{tpu_custom_call.1} parent=0
    #allocation2 [shape = 'u8[4096]{0}', space=vmem, size = 0x1000, scoped, tag = 'input window, operand 0, single buffered']
    #allocation3 [shape = 's32[1]{0}', space=sflag, size = 0x4, scoped, tag = 'scoped memory for tpu_custom_call.1']
    #allocation4 [shape = 's32[1]{0}', space=sflag, size = 0x4, scoped, tag = 'scoped memory for tpu_custom_call.1']
    #allocation5 [shape = 'u8[4096]{0}', space=vmem, size = 0x1000, scoped, tag = 'output window, operand 0, single buffered']
    %9 = vsyncpa [#allocation3], 0
    %10 = vsyncpa [#allocation4], 0
    // Predicated region
    $region2: #{tpu_custom_call.1} parent=1 // pred_check
      _
    $region3: #{tpu_custom_call.1} parent=1 // pred_check_branch
      %12 = sbr.rel (0) target = $region5
    $region4: #{tpu_custom_call.1} parent=1 // pred_region
      %s14 = ssub.s32 128, 128
      %15 = vsyncadd [#allocation3], %s14
      %s17 = sshll.u32 [#allocation2], 4
      %s18 = int_to_ptr.vmem [resolvable:$true] %s17
      %20 = dma.hbm_to_vmem [thread:$0]  %s0, 128, %s18, [#allocation3]
    $region5: #{tpu_custom_call.1} parent=1 // pred_fallthru
      _
    // Predicated region
    $region6: #{tpu_custom_call.1} parent=1 // pred_check
      _
    $region7: #{tpu_custom_call.1} parent=1 // pred_check_branch
      %22 = sbr.rel (0) target = $region9
    $region8: #{tpu_custom_call.1} parent=1 // pred_region
      _
    $region9: #{tpu_custom_call.1} parent=1 // pred_fallthru
      _
    // Predicated region
    $region10: #{tpu_custom_call.1} parent=1 // pred_check
      _
    $region11: #{tpu_custom_call.1} parent=1 // pred_check_branch
      %24 = sbr.rel (0) target = $region13
    $region12: #{tpu_custom_call.1} parent=1 // pred_region
      _
    $region13: #{tpu_custom_call.1} parent=1 // pred_fallthru
      _
    // Predicated region
    $region14: #{tpu_custom_call.1} parent=1 // pred_check
      _
    $region15: #{tpu_custom_call.1} parent=1 // pred_check_branch
      %26 = sbr.rel (0) target = $region17
    $region16: #{tpu_custom_call.1} parent=1 // pred_region
      _
    $region17: #{tpu_custom_call.1} parent=1 // pred_fallthru
      _
    // Predicated region
    $region18: #{tpu_custom_call.1} parent=1 // pred_check
      _
    $region19: #{tpu_custom_call.1} parent=1 // pred_check_branch
      %28 = sbr.rel (0) target = $region21
    $region20: #{tpu_custom_call.1} parent=1 // pred_region
      %29 = dma.done [#allocation3], 128
    $region21: #{tpu_custom_call.1} parent=1 // pred_fallthru
      _
    %v30 = vld [vmem:[#allocation2] sm:$0xff]
    %v31 = vld [vmem:[%s1] sm:$0x1]
    %v32 = vld [vmem:[%s2] sm:$0x1]
    %v33 = vld [vmem:[%s3] sm:$0x1]
    %34 = vrot.lane.b32.xlu0 %v30, 127
    %v35 = vpop.permute.xlu0 %34
    %36 = vrot.lane.b32.xlu0 %v30, 1
    %v37 = vpop.permute.xlu0 %36
    %v39 = vlaneseq
    %v40 = vshrl.u32 %v39, 7
    %v41 = vsub.s32 0, %v40
    %v42 = vrot.slane %v31, %v41
    %v44 = vmul.f32 %v30, %v42
    %v46 = vlaneseq
    %v47 = vshrl.u32 %v46, 7
    %v48 = vsub.s32 0, %v47
    %v49 = vrot.slane %v32, %v48
    %v51 = vmul.f32 %v35, %v49
    %v53 = vlaneseq
    %v54 = vshrl.u32 %v53, 7
    %v55 = vsub.s32 0, %v54
    %v56 = vrot.slane %v33, %v55
    %v58 = vmul.f32 %v37, %v56
    %v59 = vadd.f32 %v51, %v58
    %v60 = vadd.f32 %v44, %v59
    %61 = vst [vmem:[#allocation5] sm:$0xff] %v60
    // Predicated region
    $region22: #{tpu_custom_call.1} parent=1 // pred_check
      _
    $region23: #{tpu_custom_call.1} parent=1 // pred_check_branch
      %63 = sbr.rel (0) target = $region25
    $region24: #{tpu_custom_call.1} parent=1 // pred_region
      %s65 = ssub.s32 128, 128
      %66 = vsyncadd [#allocation4], %s65
      %s68 = sshll.u32 [#allocation5], 4
      %s69 = int_to_ptr.vmem [resolvable:$true] %s68
      %71 = dma.vmem_to_hbm [thread:$0]  %s69, 128, %s4, [#allocation4]
    $region25: #{tpu_custom_call.1} parent=1 // pred_fallthru
      _
    // Predicated region
    $region26: #{tpu_custom_call.1} parent=1 // pred_check
      _
    $region27: #{tpu_custom_call.1} parent=1 // pred_check_branch
      %73 = sbr.rel (0) target = $region29
    $region28: #{tpu_custom_call.1} parent=1 // pred_region
      %74 = dma.done [#allocation4], 128
    $region29: #{tpu_custom_call.1} parent=1 // pred_fallthru
      _
    %75 = vsyncpa [#allocation3], 1
    %76 = vsyncpa [#allocation4], 1

</llo_original>
